<compile_context>
chip_gen: v7x
topology: tpu7x:2x2x1
jax: 0.10.0
libtpu: 0.0.40
codegen_flags: <defaults>
</compile_context>

<pallas_src>
import functools
import math

import numpy as np
import jax
import jax.numpy as jnp
from jax import lax
from jax.experimental import pallas as pl
from jax.experimental.pallas import tpu as pltpu

EPS = 1e-5

# Per-grid-step streamed working set (in + out + periodic params).  Double
# buffered this is ~24 MiB, under the explicit 48 MiB VMEM limit on all of
# v5e / v6e / v7x while keeping per-step DMA >> the ~0.35 us step overhead.
_TARGET_STEP_BYTES = 12 << 20
_VMEM_LIMIT_BYTES = 48 << 20


# ---------------------------------------------------------------------------
# Helpers
# ---------------------------------------------------------------------------
def _round_up(v, m):
    return -(-v // m) * m


def _lcm(a, b):
    return a * b // math.gcd(a, b)


def _sublane_multiple(dtype):
    """Dtype-native sublane multiple: 8 for f32, 16 for bf16, 32 for int8."""
    return max(8, 32 // np.dtype(dtype).itemsize)


def _pick_tiles(n_rows, n_cols, itemsize, *, row_align, row_period=1,
                step_bytes=_TARGET_STEP_BYTES):
    """Row/col tile sizes budgeted on lane-padded per-step streamed bytes."""
    # Bytes per element that scale with the tile: input + output blocks in the
    # data dtype, plus (for row-periodic params) the f32 scale/shift slabs.
    elem_bytes = 2 * itemsize + (8 if row_period > 1 else 0)
    padded_cols = _round_up(n_cols, 128)

    # Column tiling only when even a minimum-height full-width block exceeds
    # the budget and the width is lane-aligned (otherwise keep full rows).
    tc = n_cols
    if n_cols % 128 == 0 and row_align * padded_cols * elem_bytes > step_bytes:
        tc = (step_bytes // (row_align * elem_bytes)) // 128 * 128
        tc = min(max(tc, 128), n_cols)

    ptc = _round_up(tc, 128)
    align = _lcm(row_align, row_period)
    if n_rows * ptc * elem_bytes <= step_bytes:
        tr = n_rows                              # single full-extent row block
    else:
        tr = (step_bytes // (ptc * elem_bytes)) // align * align
        tr = min(max(tr, align), n_rows)
    return tr, tc


# ---------------------------------------------------------------------------
# Post-init forward: y = x * scale + shift
# ---------------------------------------------------------------------------
def _affine_kernel(x_ref, scale_ref, shift_ref, y_ref):
    # Pure load-FMA-store stream; FMA in f32, cast only on the store.
    x = x_ref[...].astype(jnp.float32)
    y_ref[...] = (x * scale_ref[...] + shift_ref[...]).astype(y_ref.dtype)


def _affine_2d(x2, s_pat, b_pat, *, step_bytes=_TARGET_STEP_BYTES):
    """Tiled, software-pipelined affine over (R, C).

    s_pat / b_pat are f32 with shape (P, C); the scale/shift pattern repeats
    every P rows of x2 (P == 1 means plain per-column broadcast).
    """
    R, C = x2.shape
    P = s_pat.shape[0]
    itemsize = np.dtype(x2.dtype).itemsize
    row_align = _sublane_multiple(x2.dtype)
    tr, tc = _pick_tiles(R, C, itemsize, row_align=row_align, row_period=P,
                         step_bytes=step_bytes)

    if P > 1:
        # Expand the per-period pattern to the row-tile height once in XLA so
        # the kernel stays a pure same-shape FMA (no in-kernel relayout).
        s_pat = jnp.tile(s_pat, (tr // P, 1))
        b_pat = jnp.tile(b_pat, (tr // P, 1))
    pr = s_pat.shape[0]

    nr = pl.cdiv(R, tr)
    nc = pl.cdiv(C, tc)
    # Grid order (cols, rows): rows vary fastest, so the scale/shift blocks
    # (constant row-block index) stay resident and are not re-DMA'd per step.
    return pl.pallas_call(
        _affine_kernel,
        out_shape=jax.ShapeDtypeStruct((R, C), x2.dtype),
        grid=(nc, nr),
        in_specs=[
            pl.BlockSpec((tr, tc), lambda j, i: (i, j)),
            pl.BlockSpec((pr, tc), lambda j, i: (0, j)),
            pl.BlockSpec((pr, tc), lambda j, i: (0, j)),
        ],
        out_specs=pl.BlockSpec((tr, tc), lambda j, i: (i, j)),
        compiler_params=pltpu.CompilerParams(
            dimension_semantics=("parallel", "parallel"),
            vmem_limit_bytes=_VMEM_LIMIT_BYTES),
    )(x2, s_pat, b_pat)


def actnorm_forward(x, log_scale, shift, *, step_bytes=_TARGET_STEP_BYTES):
    """Post-init forward: (x * exp(log_scale) + shift, sum(log_scale))."""
    N, D = x.shape
    # Hoisted out of the kernel: tiny (D,) EUP / reduction work, done once.
    scale = jnp.exp(log_scale).astype(jnp.float32)
    shift_f = shift.astype(jnp.float32)
    logdet = jnp.sum(log_scale)

    if D % 128 == 0:
        # Already lane-dense.
        y = _affine_2d(x, scale.reshape(1, D), shift_f.reshape(1, D),
                       step_bytes=step_bytes)
    elif (N * D) % 128 == 0:
        # Generalized lane-dense repack: (N, D) viewed as (N*D/128, 128) is a
        # free row-major relayout; the per-feature params repeat every
        # P = lcm(D,128)/128 rows of the repacked view.
        R = (N * D) // 128
        L = _lcm(D, 128)
        P = L // 128
        reps = L // D
        x2 = x.reshape(R, 128)
        s2 = jnp.tile(scale, reps).reshape(P, 128)
        b2 = jnp.tile(shift_f, reps).reshape(P, 128)
        y = _affine_2d(x2, s2, b2, step_bytes=step_bytes).reshape(N, D)
    else:
        # TODO(synk): this fallback uses lane-masked partial stores; pad N so
        # N*D % 128 == 0 upstream to always hit the lane-dense path.
        y = _affine_2d(x, scale.reshape(1, D), shift_f.reshape(1, D),
                       step_bytes=step_bytes)
    return y, logdet


# ---------------------------------------------------------------------------
# Data-dependent init: single-pass pivoted per-feature stats
# ---------------------------------------------------------------------------
def _stats_kernel(x_ref, logscale_ref, shift_ref,
                  sum_ref, sumsq_ref, pivot_ref, *, n_rows, tile, eps):
    i = pl.program_id(0)
    nprog = pl.num_programs(0)
    x = x_ref[...].astype(jnp.float32)                       # (tile, D) in f32

    @pl.when(i == 0)
    def _():
        # Pivoted accumulation: subtract the first row before accumulating so
        # E[(x-p)^2] - E[x-p]^2 does not suffer catastrophic cancellation.
        pivot_ref[...] = x[0:1, :]
        sum_ref[...] = jnp.zeros_like(sum_ref)
        sumsq_ref[...] = jnp.zeros_like(sumsq_ref)

    def _accum(xc):
        sum_ref[...] += jnp.sum(xc, axis=0, keepdims=True)
        sumsq_ref[...] += jnp.sum(xc * xc, axis=0, keepdims=True)

    if n_rows % tile == 0:
        _accum(x - pivot_ref[...])
    else:
        # Only the final tile can be ragged; full tiles skip the mask cost.
        @pl.when(i < nprog - 1)
        def _():
            _accum(x - pivot_ref[...])

        @pl.when(i == nprog - 1)
        def _():
            row = i * tile + lax.broadcasted_iota(jnp.int32, x.shape, 0)
            _accum(jnp.where(row < n_rows, x - pivot_ref[...], 0.0))

    @pl.when(i == nprog - 1)
    def _():
        inv_n = 1.0 / float(n_rows)
        mean_c = sum_ref[...] * inv_n                      # E[x - pivot]
        var = jnp.maximum(sumsq_ref[...] * inv_n - mean_c * mean_c, 0.0)
        mean = pivot_ref[...] + mean_c
        # log(1/sqrt(var+eps)) == -0.5*log(var+eps); exp(log_scale) == rsqrt.
        logscale_ref[...] = -0.5 * jnp.log(var + eps)
        shift_ref[...] = -mean * lax.rsqrt(var + eps)


def actnorm_init_forward(x, *, eps=EPS, step_bytes=_TARGET_STEP_BYTES):
    """First forward call: data-dependent init + transform.
    Returns (y, logdet, log_scale, shift)."""
    N, D = x.shape
    row_align = _sublane_multiple(x.dtype)
    tr, _ = _pick_tiles(N, D, np.dtype(x.dtype).itemsize,
                        row_align=row_align, step_bytes=step_bytes)

    log_scale2, shift2 = pl.pallas_call(
        functools.partial(_stats_kernel, n_rows=N, tile=tr, eps=eps),
        out_shape=(
            jax.ShapeDtypeStruct((1, D), jnp.float32),
            jax.ShapeDtypeStruct((1, D), jnp.float32),
        ),
        grid=(pl.cdiv(N, tr),),
        in_specs=[pl.BlockSpec((tr, D), lambda i: (i, 0))],
        out_specs=(
            pl.BlockSpec((1, D), lambda i: (0, 0)),
            pl.BlockSpec((1, D), lambda i: (0, 0)),
        ),
        scratch_shapes=[
            pltpu.VMEM((1, D), jnp.float32),   # sum(x - pivot)
            pltpu.VMEM((1, D), jnp.float32),   # sum((x - pivot)^2)
            pltpu.VMEM((1, D), jnp.float32),   # pivot
        ],
        compiler_params=pltpu.CompilerParams(
            dimension_semantics=("arbitrary",),   # batch axis is a reduction
            vmem_limit_bytes=_VMEM_LIMIT_BYTES),
    )(x)

    log_scale = log_scale2.reshape(D)
    shift = shift2.reshape(D)
    # Reuse the optimized post-init path for the actual transform.
    y, logdet = actnorm_forward(x, log_scale, shift, step_bytes=step_bytes)
    return y, logdet, log_scale, shift


# ---------------------------------------------------------------------------
# Pure-JAX reference of the PyTorch forward semantics
# ---------------------------------------------------------------------------
def _ref_init_forward(x, eps=EPS):
    mean = x.mean(axis=0)
    zero_mean = x - mean
    var = (zero_mean ** 2).mean(axis=0)
    std = (var + eps) ** 0.5
    log_scale = jnp.log(1.0 / std)
    shift = -mean * jnp.exp(log_scale)
    y = x * jnp.exp(log_scale) + shift
    return y, log_scale.sum(), log_scale, shift


def _check(x, *, step_bytes=_TARGET_STEP_BYTES, atol=1e-4, rtol=1e-4):
    y, logdet, log_scale, shift = actnorm_init_forward(x, step_bytes=step_bytes)
    y2, logdet2 = actnorm_forward(x, log_scale, shift, step_bytes=step_bytes)
    jax.block_until_ready((y, logdet, log_scale, shift, y2, logdet2))

    y_ref, logdet_ref, ls_ref, sh_ref = _ref_init_forward(x)
    assert jnp.allclose(y, y_ref, atol=atol, rtol=rtol)
    assert jnp.allclose(logdet, logdet_ref, atol=atol, rtol=rtol)
    assert jnp.allclose(log_scale, ls_ref, atol=atol, rtol=rtol)
    assert jnp.allclose(shift, sh_ref, atol=atol, rtol=rtol)
    assert jnp.allclose(y2, y_ref, atol=atol, rtol=rtol)
    assert jnp.allclose(logdet2, logdet_ref, atol=atol, rtol=rtol)


if __name__ == "__main__":
    key = jax.random.PRNGKey(0)
    k1, k2, k3, k4 = jax.random.split(key, 4)

    # Primary case: batch=8, dim=32 (lane-dense repack, period 1).
    _check(jax.random.normal(k1, (8, 32), dtype=jnp.float32) * 2.0 + 0.5)

    # Generalized repack: 128 % D != 0 but N*D % 128 == 0 (period 3).
    _check(jax.random.normal(k2, (16, 48), dtype=jnp.float32) * 1.5 - 0.3)

    # Fallback (masked-store) path: N*D % 128 != 0.
    _check(jax.random.normal(k3, (7, 20), dtype=jnp.float32) * 0.7 + 2.0)

    # Multi-tile grids with ragged final tiles (tiny step budget to force it).
    _check(jax.random.normal(k4, (100, 32), dtype=jnp.float32) * 3.0 - 1.0,
           step_bytes=8192)

    print("KERNEL_OK")
</pallas_src>

<mosaic_0001>
module attributes {stable_mosaic.version = 11 : i64} {
  func.func @_stats_kernel(%arg0: i32, %arg1: memref<8x32xf32, #tpu.memory_space<vmem>>, %arg2: memref<1x32xf32, #tpu.memory_space<vmem>>, %arg3: memref<1x32xf32, #tpu.memory_space<vmem>>, %arg4: memref<1x32xf32, #tpu.memory_space<vmem>>, %arg5: memref<1x32xf32, #tpu.memory_space<vmem>>, %arg6: memref<1x32xf32, #tpu.memory_space<vmem>>) attributes {dimension_semantics = [#tpu.dimension_semantics<arbitrary>], iteration_bounds = array<i64: 1>, scalar_prefetch = 0 : i64, scratch_operands = 3 : i64, tpu.core_type = #tpu.core_type<tc>, window_params = [{transform_indices = @transform_0, window_bounds = array<i64: 8, 32>}, {pipeline_mode = #tpu.pipeline_mode<synchronous>, transform_indices = @transform_1, window_bounds = array<i64: 1, 32>}, {pipeline_mode = #tpu.pipeline_mode<synchronous>, transform_indices = @transform_2, window_bounds = array<i64: 1, 32>}]} {
    %c0 = arith.constant 0 : index
    %c0_0 = arith.constant 0 : index
    %0 = vector.load %arg1[%c0, %c0_0] : memref<8x32xf32, #tpu.memory_space<vmem>>, vector<8x32xf32>
    %c0_i32 = arith.constant 0 : i32
    %1 = arith.cmpi eq, %arg0, %c0_i32 : i32
    %2 = arith.extui %1 : i1 to i32
    %c0_i32_1 = arith.constant 0 : i32
    %3 = arith.cmpi ne, %2, %c0_i32_1 : i32
    scf.if %3 {
      %21 = vector.extract_strided_slice %0 {offsets = [0, 0], sizes = [1, 32], strides = [1, 1]} : vector<8x32xf32> to vector<1x32xf32>
      %c0_15 = arith.constant 0 : index
      %c0_16 = arith.constant 0 : index
      %22 = vector.load %arg6[%c0_15, %c0_16] : memref<1x32xf32, #tpu.memory_space<vmem>>, vector<1x32xf32>
      tpu.vector_store %arg6[%c0_15, %c0_16], %21 {strides = array<i32>} : memref<1x32xf32, #tpu.memory_space<vmem>>, vector<1x32xf32>,
      %cst_17 = arith.constant 0.000000e+00 : f32
      %23 = vector.broadcast %cst_17 : f32 to vector<1x32xf32>
      %c0_18 = arith.constant 0 : index
      %c0_19 = arith.constant 0 : index
      %24 = vector.load %arg4[%c0_18, %c0_19] : memref<1x32xf32, #tpu.memory_space<vmem>>, vector<1x32xf32>
      tpu.vector_store %arg4[%c0_18, %c0_19], %23 {strides = array<i32>} : memref<1x32xf32, #tpu.memory_space<vmem>>, vector<1x32xf32>,
      %cst_20 = arith.constant 0.000000e+00 : f32
      %25 = vector.broadcast %cst_20 : f32 to vector<1x32xf32>
      %c0_21 = arith.constant 0 : index
      %c0_22 = arith.constant 0 : index
      %26 = vector.load %arg5[%c0_21, %c0_22] : memref<1x32xf32, #tpu.memory_space<vmem>>, vector<1x32xf32>
      tpu.vector_store %arg5[%c0_21, %c0_22], %25 {strides = array<i32>} : memref<1x32xf32, #tpu.memory_space<vmem>>, vector<1x32xf32>,
    } else {
    }
    %c0_2 = arith.constant 0 : index
    %c0_3 = arith.constant 0 : index
    %4 = vector.load %arg6[%c0_2, %c0_3] : memref<1x32xf32, #tpu.memory_space<vmem>>, vector<1x32xf32>
    %5 = vector.broadcast %4 : vector<1x32xf32> to vector<8x32xf32>
    %6 = arith.subf %0, %5 : vector<8x32xf32>
    %c0_4 = arith.constant 0 : index
    %c0_5 = arith.constant 0 : index
    %7 = vector.load %arg4[%c0_4, %c0_5] : memref<1x32xf32, #tpu.memory_space<vmem>>, vector<1x32xf32>
    %cst = arith.constant dense<0.000000e+00> : vector<32xf32>
    %8 = vector.multi_reduction <add>, %6, %cst [0] : vector<8x32xf32> to vector<32xf32>
    %9 = vector.shape_cast %8 : vector<32xf32> to vector<1x32xf32>
    %10 = arith.addf %7, %9 : vector<1x32xf32>
    %c0_6 = arith.constant 0 : index
    %c0_7 = arith.constant 0 : index
    %11 = vector.load %arg4[%c0_6, %c0_7] : memref<1x32xf32, #tpu.memory_space<vmem>>, vector<1x32xf32>
    tpu.vector_store %arg4[%c0_6, %c0_7], %10 {strides = array<i32>} : memref<1x32xf32, #tpu.memory_space<vmem>>, vector<1x32xf32>,
    %c0_8 = arith.constant 0 : index
    %c0_9 = arith.constant 0 : index
    %12 = vector.load %arg5[%c0_8, %c0_9] : memref<1x32xf32, #tpu.memory_space<vmem>>, vector<1x32xf32>
    %13 = arith.mulf %6, %6 : vector<8x32xf32>
    %cst_10 = arith.constant dense<0.000000e+00> : vector<32xf32>
    %14 = vector.multi_reduction <add>, %13, %cst_10 [0] : vector<8x32xf32> to vector<32xf32>
    %15 = vector.shape_cast %14 : vector<32xf32> to vector<1x32xf32>
    %16 = arith.addf %12, %15 : vector<1x32xf32>
    %c0_11 = arith.constant 0 : index
    %c0_12 = arith.constant 0 : index
    %17 = vector.load %arg5[%c0_11, %c0_12] : memref<1x32xf32, #tpu.memory_space<vmem>>, vector<1x32xf32>
    tpu.vector_store %arg5[%c0_11, %c0_12], %16 {strides = array<i32>} : memref<1x32xf32, #tpu.memory_space<vmem>>, vector<1x32xf32>,
    %c0_i32_13 = arith.constant 0 : i32
    %18 = arith.cmpi eq, %arg0, %c0_i32_13 : i32
    %19 = arith.extui %18 : i1 to i32
    %c0_i32_14 = arith.constant 0 : i32
    %20 = arith.cmpi ne, %19, %c0_i32_14 : i32
    scf.if %20 {
      %c0_15 = arith.constant 0 : index
      %c0_16 = arith.constant 0 : index
      %21 = vector.load %arg4[%c0_15, %c0_16] : memref<1x32xf32, #tpu.memory_space<vmem>>, vector<1x32xf32>
      %cst_17 = arith.constant 1.250000e-01 : f32
      %22 = vector.broadcast %cst_17 : f32 to vector<1x32xf32>
      %23 = arith.mulf %21, %22 : vector<1x32xf32>
      %c0_18 = arith.constant 0 : index
      %c0_19 = arith.constant 0 : index
      %24 = vector.load %arg5[%c0_18, %c0_19] : memref<1x32xf32, #tpu.memory_space<vmem>>, vector<1x32xf32>
      %cst_20 = arith.constant 1.250000e-01 : f32
      %25 = vector.broadcast %cst_20 : f32 to vector<1x32xf32>
      %26 = arith.mulf %24, %25 : vector<1x32xf32>
      %27 = arith.mulf %23, %23 : vector<1x32xf32>
      %28 = arith.subf %26, %27 : vector<1x32xf32>
      %cst_21 = arith.constant 0.000000e+00 : f32
      %29 = vector.broadcast %cst_21 : f32 to vector<1x32xf32>
      %30 = arith.maximumf %28, %29 : vector<1x32xf32>
      %c0_22 = arith.constant 0 : index
      %c0_23 = arith.constant 0 : index
      %31 = vector.load %arg6[%c0_22, %c0_23] : memref<1x32xf32, #tpu.memory_space<vmem>>, vector<1x32xf32>
      %32 = arith.addf %31, %23 : vector<1x32xf32>
      %cst_24 = arith.constant 9.99999974E-6 : f32
      %33 = vector.broadcast %cst_24 : f32 to vector<1x32xf32>
      %34 = arith.addf %30, %33 : vector<1x32xf32>
      %35 = math.log %34 : vector<1x32xf32>
      %cst_25 = arith.constant -5.000000e-01 : f32
      %36 = vector.broadcast %cst_25 : f32 to vector<1x32xf32>
      %37 = arith.mulf %36, %35 : vector<1x32xf32>
      %c0_26 = arith.constant 0 : index
      %c0_27 = arith.constant 0 : index
      %38 = vector.load %arg2[%c0_26, %c0_27] : memref<1x32xf32, #tpu.memory_space<vmem>>, vector<1x32xf32>
      tpu.vector_store %arg2[%c0_26, %c0_27], %37 {strides = array<i32>} : memref<1x32xf32, #tpu.memory_space<vmem>>, vector<1x32xf32>,
      %cst_28 = arith.constant 0.000000e+00 : f32
      %39 = vector.broadcast %cst_28 : f32 to vector<1x32xf32>
      %40 = arith.subf %39, %32 : vector<1x32xf32>
      %cst_29 = arith.constant 9.99999974E-6 : f32
      %41 = vector.broadcast %cst_29 : f32 to vector<1x32xf32>
      %42 = arith.addf %30, %41 : vector<1x32xf32>
      %43 = math.rsqrt %42 : vector<1x32xf32>
      %44 = arith.mulf %40, %43 : vector<1x32xf32>
      %c0_30 = arith.constant 0 : index
      %c0_31 = arith.constant 0 : index
      %45 = vector.load %arg3[%c0_30, %c0_31] : memref<1x32xf32, #tpu.memory_space<vmem>>, vector<1x32xf32>
      tpu.vector_store %arg3[%c0_30, %c0_31], %44 {strides = array<i32>} : memref<1x32xf32, #tpu.memory_space<vmem>>, vector<1x32xf32>,
    } else {
    }
    return
  }
  func.func @transform_0(%arg0: i32) -> (i32, i32) {
    %c0_i32 = arith.constant 0 : i32
    %c0_i32_0 = arith.constant 0 : i32
    return %arg0, %c0_i32 : i32, i32
  }
  func.func @transform_1(%arg0: i32) -> (i32, i32) {
    %c0_i32 = arith.constant 0 : i32
    %c0_i32_0 = arith.constant 0 : i32
    %c0_i32_1 = arith.constant 0 : i32
    return %c0_i32, %c0_i32_0 : i32, i32
  }
  func.func @transform_2(%arg0: i32) -> (i32, i32) {
    %c0_i32 = arith.constant 0 : i32
    %c0_i32_0 = arith.constant 0 : i32
    %c0_i32_1 = arith.constant 0 : i32
    return %c0_i32, %c0_i32_0 : i32, i32
  }
}

</mosaic_0001>

<llo_original>
// kernel: tpu_custom_call.1
$region0: #{tpu_custom_call.1}
  #allocation0 [shape = 'u32[]', space=smem, size = 0x4, offset = 0x4, fixed_abs, tag = 'smem constant byte address 0x4 - core index']
  #allocation1 [shape = 'u32[144,128]{1,0:T(1,128)}', space=vmem, size = 0x12000, scoped, tag = 'internal scratch']
  #allocation2 [shape = 'f32[1,32]{1,0:T(1,128)}', space=vmem, size = 0x200, scoped, tag = 'scratch operand']
  #allocation3 [shape = 'f32[1,32]{1,0:T(1,128)}', space=vmem, size = 0x200, scoped, tag = 'scratch operand']
  #allocation4 [shape = 'f32[1,32]{1,0:T(1,128)}', space=vmem, size = 0x200, scoped, tag = 'scratch operand']
  %s0 = inlined_call_operand.hbm [shape: f32[8,32], index: 0, kind: input, shape index: {}]
  %s1 = inlined_call_operand.hbm [shape: f32[1,32], index: 1, kind: output, shape index: {0}]
  %s2 = inlined_call_operand.hbm [shape: f32[1,32], index: 2, kind: output, shape index: {1}]
  %3 = xla_tuple %s1, %s2
  %s4 = sld [smem:[#allocation0]]
  $region34: #{tpu_custom_call.1} parent=0
    _
  %s6 = ssub.s32 1, %s4
  %s7 = scalar_select 0, %s6, %s4
  $region1: #{tpu_custom_call.1} parent=0
    #allocation5 [shape = 'u8[4096]{0}', space=vmem, size = 0x1000, scoped, tag = 'input window, operand 0, single buffered']
    #allocation6 [shape = 's32[1]{0}', space=sflag, size = 0x4, scoped, tag = 'scoped memory for tpu_custom_call.1']
    #allocation7 [shape = 's32[1]{0}', space=sflag, size = 0x4, scoped, tag = 'scoped memory for tpu_custom_call.1']
    #allocation8 [shape = 'u8[512]{0}', space=vmem, size = 0x400, scoped, tag = 'output window, operand 0, single buffered']
    #allocation9 [shape = 'u8[512]{0}', space=vmem, size = 0x400, scoped, tag = 'output window, operand 1, single buffered']
    #allocation10 [shape = 's32[1]{0}', space=sflag, size = 0x4, scoped, tag = 'scoped memory for tpu_custom_call.1']
    %8 = vsyncpa [#allocation6], 0
    %9 = vsyncpa [#allocation7], 0
    %10 = vsyncpa [#allocation10], 0
    // Predicated region
    $region2: #{tpu_custom_call.1} parent=1 // pred_check
      _
    $region3: #{tpu_custom_call.1} parent=1 // pred_check_branch
      %12 = sbr.rel (0) target = $region5
    $region4: #{tpu_custom_call.1} parent=1 // pred_region
      %s14 = ssub.s32 128, 128
      %15 = vsyncadd [#allocation6], %s14
      %s17 = sshll.u32 [#allocation5], 4
      %s18 = int_to_ptr.vmem [resolvable:$true] %s17
      %20 = dma.hbm_to_vmem [thread:$0]  %s0, 128, %s18, [#allocation6]
    $region5: #{tpu_custom_call.1} parent=1 // pred_fallthru
      _
    // Predicated region
    $region6: #{tpu_custom_call.1} parent=1 // pred_check
      _
    $region7: #{tpu_custom_call.1} parent=1 // pred_check_branch
      %22 = sbr.rel (0) target = $region9
    $region8: #{tpu_custom_call.1} parent=1 // pred_region
      %23 = dma.done [#allocation6], 128
    $region9: #{tpu_custom_call.1} parent=1 // pred_fallthru
      _
    %v24 = vld [vmem:[#allocation5] sm:$0xff]
    %p25 = scmp.eq.s32.totalorder 0, 0
    // Predicated region
    $region10: #{tpu_custom_call.1} parent=1 // pred_check
      %p26 = pneg %p25
    $region11: #{tpu_custom_call.1} parent=1 // pred_check_branch
      %28 = sbr.rel (%p26) target = $region13
    $region12: #{tpu_custom_call.1} parent=1 // pred_region
      %vm29 = vcmask 253952
      %30 = vst.msk [vmem:[#allocation4] sm:$0x1] %vm29, %v24
      %31 = vst.msk [vmem:[#allocation2] sm:$0x1] %vm29, 0.0
      %32 = vst.msk [vmem:[#allocation3] sm:$0x1] %vm29, 0.0
    $region13: #{tpu_custom_call.1} parent=1 // pred_fallthru
      _
    %v33 = vld [vmem:[#allocation4] sm:$0x1]
    %v35 = vlaneseq
    %v36 = vshrl.u32 %v35, 7
    %v37 = vsub.s32 0, %v36
    %v38 = vrot.slane %v33, %v37
    %v40 = vsub.f32 %v24, %v38
    %v41 = vld [vmem:[#allocation2] sm:$0x1]
    %vm42 = vcmask 261120
    %v43 = vsel %vm42, %v40, 0.0
    %v44 = vrot.slane %v43, 4
    %v45 = vadd.f32 %v43, %v44
    %v46 = vrot.slane %v45, 2
    %v47 = vadd.f32 %v45, %v46
    %v48 = vrot.slane %v47, 1
    %v49 = vadd.f32 %v47, %v48
    %v50 = vadd.f32 %v41, %v49
    %vm51 = vcmask 253952
    %52 = vst.msk [vmem:[#allocation2] sm:$0x1] %vm51, %v50
    %v53 = vld [vmem:[#allocation3] sm:$0x1]
    %v54 = vmul.f32 %v40, %v40
    %v55 = vsel %vm42, %v54, 0.0
    %v56 = vrot.slane %v55, 4
    %v57 = vadd.f32 %v55, %v56
    %v58 = vrot.slane %v57, 2
    %v59 = vadd.f32 %v57, %v58
    %v60 = vrot.slane %v59, 1
    %v61 = vadd.f32 %v59, %v60
    %v62 = vadd.f32 %v53, %v61
    %63 = vst.msk [vmem:[#allocation3] sm:$0x1] %vm51, %v62
    // Predicated region
    $region14: #{tpu_custom_call.1} parent=1 // pred_check
      %p64 = pneg %p25
    $region15: #{tpu_custom_call.1} parent=1 // pred_check_branch
      %66 = sbr.rel (%p64) target = $region17
    $region16: #{tpu_custom_call.1} parent=1 // pred_region
      %v67 = vld [vmem:[#allocation2] sm:$0x1]
      %v68 = vmul.f32 %v67, 0.125
      %v69 = vld [vmem:[#allocation3] sm:$0x1]
      %v70 = vmul.f32 %v69, 0.125
      %v71 = vmul.f32 %v68, %v68
      %v72 = vsub.f32 %v70, %v71
      %v73 = vmax.f32 %v72, 0.0
      %v74 = vld [vmem:[#allocation4] sm:$0x1]
      %v75 = vadd.f32 %v74, %v68
      %v76 = vadd.f32 %v73, 1e-05
      %v77 = vlog2.pop %v76
      %v78 = vmul.f32 %v77, 0.6931472
      %v79 = vmul.f32 %v78, -0.5
      %80 = vst.msk [vmem:[#allocation8] sm:$0x1] %vm51, %v79
      %v81 = vsub.f32 0.0, %v75
      %v82 = vrsqrt.pop %v76
      %v83 = vmul.f32 %v81, %v82
      %84 = vst.msk [vmem:[#allocation9] sm:$0x1] %vm51, %v83
    $region17: #{tpu_custom_call.1} parent=1 // pred_fallthru
      _
    // Predicated region
    $region18: #{tpu_custom_call.1} parent=1 // pred_check
      _
    $region19: #{tpu_custom_call.1} parent=1 // pred_check_branch
      %86 = sbr.rel (0) target = $region21
    $region20: #{tpu_custom_call.1} parent=1 // pred_region
      %s88 = ssub.s32 16, 16
      %89 = vsyncadd [#allocation7], %s88
      %s91 = sshll.u32 [#allocation8], 4
      %s92 = int_to_ptr.vmem [resolvable:$true] %s91
      %94 = dma.vmem_to_hbm [thread:$0]  %s92, 16, %s1, [#allocation7]
    $region21: #{tpu_custom_call.1} parent=1 // pred_fallthru
      _
    // Predicated region
    $region22: #{tpu_custom_call.1} parent=1 // pred_check
      _
    $region23: #{tpu_custom_call.1} parent=1 // pred_check_branch
      %96 = sbr.rel (0) target = $region25
    $region24: #{tpu_custom_call.1} parent=1 // pred_region
      %s98 = ssub.s32 16, 16
      %99 = vsyncadd [#allocation10], %s98
      %s101 = sshll.u32 [#allocation9], 4
      %s102 = int_to_ptr.vmem [resolvable:$true] %s101
      %104 = dma.vmem_to_hbm [thread:$0]  %s102, 16, %s2, [#allocation10]
    $region25: #{tpu_custom_call.1} parent=1 // pred_fallthru
      _
    // Predicated region
    $region26: #{tpu_custom_call.1} parent=1 // pred_check
      _
    $region27: #{tpu_custom_call.1} parent=1 // pred_check_branch
      %106 = sbr.rel (0) target = $region29
    $region28: #{tpu_custom_call.1} parent=1 // pred_region
      %107 = dma.done [#allocation7], 16
    $region29: #{tpu_custom_call.1} parent=1 // pred_fallthru
      _
    // Predicated region
    $region30: #{tpu_custom_call.1} parent=1 // pred_check
      _
    $region31: #{tpu_custom_call.1} parent=1 // pred_check_branch
      %109 = sbr.rel (0) target = $region33
    $region32: #{tpu_custom_call.1} parent=1 // pred_region
      %110 = dma.done [#allocation10], 16
    $region33: #{tpu_custom_call.1} parent=1 // pred_fallthru
      _
    %111 = vsyncpa [#allocation6], 1
    %112 = vsyncpa [#allocation7], 1
    %113 = vsyncpa [#allocation10], 1

</llo_original>
